<compile_context>
chip_gen: v7x
topology: tpu7x:2x2x1
jax: 0.10.0
libtpu: 0.0.40
codegen_flags: <defaults>
</compile_context>

<pallas_src>
import jax
import jax.numpy as jnp
from jax.experimental import pallas as pl
from jax.experimental.pallas import tpu as pltpu


_TARGET_BLOCK_BYTES = 4 * 1024 * 1024   # ~4 MiB per pipeline buffer
_MAX_BLOCK_ELEMS = 1024 * 1024          # cap so f32 intermediates stay bounded (bf16 in)
_MIN_SPLIT_BYTES = 512 * 1024           # above this, force >=2 grid blocks (v7x megacore)


def _aglu_kernel(p_ref, x_ref, o_ref):
    # p_ref (SMEM, f32[3]) = [kappa, log(lam), 1/lam]  (clamp/log/recip hoisted).
    kappa = p_ref[0]
    log_lam = p_ref[1]
    inv_lam = p_ref[2]

    x = x_ref[...].astype(jnp.float32)          # native-dtype DMA, f32 compute
    y = kappa * x - log_lam
    t = jnp.exp(-y)                             # EUP
    sp = -jnp.log1p(t)                          # EUP; softplus(beta=-1)
    # nn.Softplus threshold (beta*y > 20 -> linear); also guards exp(-y) overflow.
    sp = jnp.where(y < jnp.float32(-20.0), y, sp)
    o_ref[...] = jnp.exp(sp * inv_lam).astype(o_ref.dtype)


def _plan_view(x):
    """Pick a copy-free (contiguous-reshape) 2-D (rows, cols) view of x."""
    total = int(x.size)
    shape = x.shape if x.ndim > 0 else (1,)
    # Preferred: lane-exact slab (fully unmasked wide stores).
    for cand in (2048, 1024, 512, 256, 128):
        if total % cand == 0:
            return total // cand, cand
    # Ragged fallback: group trailing dims until reasonably lane-dense. Still a free
    # reshape (no pad / slice passes over HBM); Pallas masks the partial lane group.
    cols = 1
    for d in reversed(shape):
        cols *= int(d)
        if cols >= 512:
            break
    return total // cols, cols


def _plan_tiles(rows, cols, itemsize):
    """Block sizes: ~_TARGET_BLOCK_BYTES/buffer, legal (mult-of-8/128 or full dim),
    and never a single block for tensors worth splitting across v7x's two cores."""
    blk = max(1024, min(_TARGET_BLOCK_BYTES // itemsize, _MAX_BLOCK_ELEMS))

    if cols * min(rows, 8) <= blk:
        # Full-width (lane-dense) blocks; tile rows only.
        col_tile = cols
        row_budget = max(1, blk // cols)
        row_tile = rows if rows <= row_budget else max(8, (row_budget // 8) * 8)
    else:
        # Even one <=8-row stripe is over budget: tile the lane dim too.
        row_tile = min(rows, 8)
        col_tile = max(128, (blk // max(row_tile, 1)) // 128 * 128)
        if col_tile >= cols:
            col_tile = cols

    # Megacore: don't leave a non-trivial tensor as a single grid block.
    nbytes = rows * cols * itemsize
    if row_tile == rows and col_tile == cols and nbytes > _MIN_SPLIT_BYTES:
        if rows >= 32:
            for parts in (4, 2):                       # prefer an even, exact split
                if rows % parts == 0 and (rows // parts) % 8 == 0:
                    row_tile = rows // parts
                    break
            else:
                row_tile = max(8, (pl.cdiv(rows, 4) // 8) * 8)
        elif cols >= 1024:
            col_tile = max(128, (pl.cdiv(cols, 4) // 128) * 128)

    return row_tile, col_tile


def aglu_forward(x, lambd, kappa):
    """x: any-shape float array (e.g. NCHW). lambd, kappa: shape-(1,) parameters."""
    orig_shape = x.shape
    dtype = x.dtype
    if x.size == 0:
        return x

    # Scalar parameter math hoisted out of the grid loop (runs once, in XLA).
    lam = jnp.maximum(lambd.astype(jnp.float32), jnp.float32(1e-4))
    params = jnp.concatenate([
        kappa.astype(jnp.float32).reshape(1),
        jnp.log(lam).reshape(1),
        (jnp.float32(1.0) / lam).reshape(1),
    ])

    rows, cols = _plan_view(x)
    x2d = x.reshape(rows, cols)                        # contiguous reshape -> free
    itemsize = x2d.dtype.itemsize
    row_tile, col_tile = _plan_tiles(rows, cols, itemsize)
    grid = (pl.cdiv(rows, row_tile), pl.cdiv(cols, col_tile))

    n = rows * cols
    cost = pl.CostEstimate(flops=8 * n,
                           transcendentals=3 * n,
                           bytes_accessed=2 * n * itemsize)

    out2d = pl.pallas_call(
        _aglu_kernel,
        out_shape=jax.ShapeDtypeStruct((rows, cols), dtype),
        grid_spec=pltpu.PrefetchScalarGridSpec(
            num_scalar_prefetch=0,
            grid=grid,
            in_specs=[
                pl.BlockSpec(memory_space=pltpu.MemorySpace.SMEM),        # (3,) params
                pl.BlockSpec((row_tile, col_tile), lambda i, j: (i, j)),  # x tile
            ],
            out_specs=pl.BlockSpec((row_tile, col_tile), lambda i, j: (i, j)),
        ),
        compiler_params=pltpu.CompilerParams(
            dimension_semantics=("parallel", "parallel"),   # shards across v7x's 2 TCs
            vmem_limit_bytes=32 * 1024 * 1024,
        ),
        cost_estimate=cost,
    )(params, x2d)

    return out2d.reshape(orig_shape)


def _aglu_ref(x, lambd, kappa):
    lam = jnp.maximum(lambd.astype(jnp.float32), 1e-4)
    y = kappa.astype(jnp.float32) * x.astype(jnp.float32) - jnp.log(lam)
    sp = -jnp.logaddexp(0.0, -y)
    return jnp.exp(sp / lam)


if __name__ == "__main__":
    key = jax.random.PRNGKey(0)
    kx, kl, kk = jax.random.split(key, 3)

    # Module-implied NCHW input, small shape.
    x = jax.random.normal(kx, (2, 4, 16, 16), dtype=jnp.float32)
    # nn.init.uniform_ -> U(0, 1), shape (1,)
    lambd = jax.random.uniform(kl, (1,), dtype=jnp.float32)
    kappa = jax.random.uniform(kk, (1,), dtype=jnp.float32)

    out = jax.block_until_ready(aglu_forward(x, lambd, kappa))
    ref = _aglu_ref(x, lambd, kappa)
    assert out.shape == x.shape and out.dtype == x.dtype
    assert jnp.allclose(out, ref, atol=1e-5, rtol=2e-5), "mismatch vs reference (f32)"

    # Ragged element count (not 128-divisible): copy-free trailing-dim grouping path.
    x_r = jax.random.normal(kx, (3, 5, 24, 40), dtype=jnp.float32)
    out_r = jax.block_until_ready(aglu_forward(x_r, lambd, kappa))
    assert jnp.allclose(out_r, _aglu_ref(x_r, lambd, kappa), atol=1e-5, rtol=2e-5)

    # Multi-block path: large enough to force the megacore row split (grid >= 4).
    x_b = jax.random.normal(kx, (8, 32, 64, 64), dtype=jnp.float32)
    out_b = jax.block_until_ready(aglu_forward(x_b, lambd, kappa))
    assert jnp.allclose(out_b, _aglu_ref(x_b, lambd, kappa), atol=1e-5, rtol=2e-5)

    # Native bf16 DMA with f32 in-kernel math.
    x_h = jax.random.normal(kx, (2, 4, 16, 16), dtype=jnp.bfloat16)
    out_h = jax.block_until_ready(aglu_forward(x_h, lambd, kappa))
    assert out_h.dtype == jnp.bfloat16
    assert jnp.allclose(out_h.astype(jnp.float32), _aglu_ref(x_h, lambd, kappa),
                        atol=2e-2, rtol=2e-2)

    print("KERNEL_OK")
</pallas_src>

<mosaic_0001>
module attributes {stable_mosaic.version = 11 : i64} {
  func.func @_aglu_kernel(%arg0: i32, %arg1: i32, %arg2: memref<3xf32, #tpu.memory_space<smem>>, %arg3: memref<1x2048xf32, #tpu.memory_space<vmem>>, %arg4: memref<1x2048xf32, #tpu.memory_space<vmem>>) attributes {dimension_semantics = [#tpu.dimension_semantics<parallel>, #tpu.dimension_semantics<parallel>], iteration_bounds = array<i64: 1, 1>, scalar_prefetch = 0 : i64, scratch_operands = 0 : i64, tpu.core_type = #tpu.core_type<tc>, window_params = [{transform_indices = @transform_0, window_bounds = array<i64: 3>}, {transform_indices = @transform_1, window_bounds = array<i64: 1, 2048>}, {transform_indices = @transform_2, window_bounds = array<i64: 1, 2048>}]} {
    %c0 = arith.constant 0 : index
    %0 = memref.load %arg2[%c0] : memref<3xf32, #tpu.memory_space<smem>>
    %c1 = arith.constant 1 : index
    %1 = memref.load %arg2[%c1] : memref<3xf32, #tpu.memory_space<smem>>
    %c2 = arith.constant 2 : index
    %2 = memref.load %arg2[%c2] : memref<3xf32, #tpu.memory_space<smem>>
    %c0_0 = arith.constant 0 : index
    %c0_1 = arith.constant 0 : index
    %3 = vector.load %arg3[%c0_0, %c0_1] : memref<1x2048xf32, #tpu.memory_space<vmem>>, vector<1x2048xf32>
    %4 = vector.broadcast %0 : f32 to vector<1x2048xf32>
    %5 = arith.mulf %4, %3 : vector<1x2048xf32>
    %6 = vector.broadcast %1 : f32 to vector<1x2048xf32>
    %7 = arith.subf %5, %6 : vector<1x2048xf32>
    %cst = arith.constant 0.000000e+00 : f32
    %8 = vector.broadcast %cst : f32 to vector<1x2048xf32>
    %9 = arith.subf %8, %7 : vector<1x2048xf32>
    %10 = math.exp %9 : vector<1x2048xf32>
    %11 = math.log1p %10 : vector<1x2048xf32>
    %cst_2 = arith.constant 0.000000e+00 : f32
    %12 = vector.broadcast %cst_2 : f32 to vector<1x2048xf32>
    %13 = arith.subf %12, %11 : vector<1x2048xf32>
    %cst_3 = arith.constant -2.000000e+01 : f32
    %14 = vector.broadcast %cst_3 : f32 to vector<1x2048xf32>
    %15 = arith.cmpf olt, %7, %14 : vector<1x2048xf32>
    %16 = arith.select %15, %7, %13 : vector<1x2048xi1>, vector<1x2048xf32>
    %17 = vector.broadcast %2 : f32 to vector<1x2048xf32>
    %18 = arith.mulf %16, %17 : vector<1x2048xf32>
    %19 = math.exp %18 : vector<1x2048xf32>
    %c0_4 = arith.constant 0 : index
    %c0_5 = arith.constant 0 : index
    %20 = vector.load %arg4[%c0_4, %c0_5] : memref<1x2048xf32, #tpu.memory_space<vmem>>, vector<1x2048xf32>
    tpu.vector_store %arg4[%c0_4, %c0_5], %19 {strides = array<i32>} : memref<1x2048xf32, #tpu.memory_space<vmem>>, vector<1x2048xf32>,
    return
  }
  func.func @transform_0(%arg0: i32, %arg1: i32) -> i32 {
    %c0_i32 = arith.constant 0 : i32
    %c0_i32_0 = arith.constant 0 : i32
    return %c0_i32 : i32
  }
  func.func @transform_1(%arg0: i32, %arg1: i32) -> (i32, i32) {
    %c0_i32 = arith.constant 0 : i32
    return %arg0, %arg1 : i32, i32
  }
  func.func @transform_2(%arg0: i32, %arg1: i32) -> (i32, i32) {
    %c0_i32 = arith.constant 0 : i32
    return %arg0, %arg1 : i32, i32
  }
}

</mosaic_0001>

<llo_original>
// kernel: tpu_custom_call.1
$region0: #{tpu_custom_call.1}
  #allocation0 [shape = 'u32[]', space=smem, size = 0x4, offset = 0x4, fixed_abs, tag = 'smem constant byte address 0x4 - core index']
  #allocation1 [shape = 'u32[144,128]{1,0:T(1,128)}', space=vmem, size = 0x12000, scoped, tag = 'internal scratch']
  %s0 = inlined_call_operand.hbm [shape: f32[3], index: 0, kind: input, shape index: {}]
  %s1 = inlined_call_operand.hbm [shape: f32[1,2048], index: 1, kind: input, shape index: {}]
  %s2 = inlined_call_operand.hbm [shape: f32[1,2048], index: 2, kind: output, shape index: {}]
  %s3 = sld [smem:[#allocation0]]
  $region26: #{tpu_custom_call.1} parent=0
    _
  %s5 = ssub.s32 1, %s3
  %s6 = scalar_select 0, %s5, %s3
  $region1: #{tpu_custom_call.1} parent=0
    #allocation2 [shape = 'u8[512]{0}', space=smem, size = 0x200, scoped, tag = 'input window, operand 0, single buffered']
    #allocation3 [shape = 's32[1]{0}', space=sflag, size = 0x4, scoped, tag = 'scoped memory for tpu_custom_call.1']
    #allocation4 [shape = 's32[1]{0}', space=sflag, size = 0x4, scoped, tag = 'scoped memory for tpu_custom_call.1']
    #allocation5 [shape = 's32[1]{0}', space=sflag, size = 0x4, scoped, tag = 'scoped memory for tpu_custom_call.1']
    #allocation6 [shape = 'u8[8192]{0}', space=vmem, size = 0x2000, scoped, tag = 'input window, operand 1, single buffered']
    #allocation7 [shape = 'u8[8192]{0}', space=vmem, size = 0x2000, scoped, tag = 'output window, operand 0, single buffered']
    %7 = vsyncpa [#allocation5], 0
    %8 = vsyncpa [#allocation3], 0
    %9 = vsyncpa [#allocation4], 0
    // Predicated region
    $region2: #{tpu_custom_call.1} parent=1 // pred_check
      _
    $region3: #{tpu_custom_call.1} parent=1 // pred_check_branch
      %11 = sbr.rel (0) target = $region5
    $region4: #{tpu_custom_call.1} parent=1 // pred_region
      %s13 = ssub.s32 16, 16
      %14 = vsyncadd [#allocation5], %s13
      %17 = dma.hbm_to_smem %s0, 16, [#allocation2], [#allocation5]
    $region5: #{tpu_custom_call.1} parent=1 // pred_fallthru
      _
    // Predicated region
    $region6: #{tpu_custom_call.1} parent=1 // pred_check
      _
    $region7: #{tpu_custom_call.1} parent=1 // pred_check_branch
      %19 = sbr.rel (0) target = $region9
    $region8: #{tpu_custom_call.1} parent=1 // pred_region
      %s21 = ssub.s32 256, 256
      %22 = vsyncadd [#allocation3], %s21
      %s24 = sshll.u32 [#allocation6], 4
      %s25 = int_to_ptr.vmem [resolvable:$true] %s24
      %27 = dma.hbm_to_vmem [thread:$0]  %s1, 256, %s25, [#allocation3]
    $region9: #{tpu_custom_call.1} parent=1 // pred_fallthru
      _
    // Predicated region
    $region10: #{tpu_custom_call.1} parent=1 // pred_check
      _
    $region11: #{tpu_custom_call.1} parent=1 // pred_check_branch
      %29 = sbr.rel (0) target = $region13
    $region12: #{tpu_custom_call.1} parent=1 // pred_region
      %30 = dma.done [#allocation5], 16
    $region13: #{tpu_custom_call.1} parent=1 // pred_fallthru
      _
    // Predicated region
    $region14: #{tpu_custom_call.1} parent=1 // pred_check
      _
    $region15: #{tpu_custom_call.1} parent=1 // pred_check_branch
      %32 = sbr.rel (0) target = $region17
    $region16: #{tpu_custom_call.1} parent=1 // pred_region
      %33 = dma.done [#allocation3], 256
    $region17: #{tpu_custom_call.1} parent=1 // pred_fallthru
      _
    %34 = sfence
    %s35 = sld [smem:[#allocation2]]
    %s36 = sld [smem:[#allocation2 + $0x1]]
    %s37 = sld [smem:[#allocation2 + $0x2]]
    %v38 = vld [vmem:[#allocation6] sm:$0xff]
    %v39 = vld [vmem:[#allocation6 + $0x8] sm:$0xff]
    %v40 = vstv %s35
    %v41 = vmul.f32 %v40, %v38
    %v42 = vmul.f32 %v40, %v39
    %v43 = vstv %s36
    %v44 = vsub.f32 %v41, %v43
    %v45 = vsub.f32 %v42, %v43
    %v46 = vsub.f32 0.0, %v44
    %v47 = vsub.f32 0.0, %v45
    %v48 = vmul.f32 %v46, 1.442695
    %v49 = vpow.pop %v48
    %v50 = vmul.f32 %v47, 1.442695
    %v51 = vpow.pop %v50
    %v52 = vadd.f32 %v49, 1.0
    %v53 = vlog2.pop %v52
    %v54 = vmul.f32 %v53, 0.6931472
    %v55 = vmul.f32 -0.5, %v49
    %v56 = vadd.f32 %v55, 1.0
    %v57 = vmul.f32 %v56, %v49
    %v58 = vand.u32 2147483647, %v49
    %vm59 = vcmp.lt.f32.partialorder %v58, 0.0004427343
    %v60 = vsel %vm59, %v57, %v54
    %v61 = vadd.f32 %v51, 1.0
    %v62 = vlog2.pop %v61
    %v63 = vmul.f32 %v62, 0.6931472
    %v64 = vmul.f32 -0.5, %v51
    %v65 = vadd.f32 %v64, 1.0
    %v66 = vmul.f32 %v65, %v51
    %v67 = vand.u32 2147483647, %v51
    %vm68 = vcmp.lt.f32.partialorder %v67, 0.0004427343
    %v69 = vsel %vm68, %v66, %v63
    %v70 = vsub.f32 0.0, %v60
    %v71 = vsub.f32 0.0, %v69
    %vm72 = vcmp.lt.f32.partialorder %v44, -20.0
    %vm73 = vcmp.lt.f32.partialorder %v45, -20.0
    %v74 = vsel %vm72, %v44, %v70
    %v75 = vsel %vm73, %v45, %v71
    %v76 = vstv %s37
    %v77 = vmul.f32 %v74, %v76
    %v78 = vmul.f32 %v75, %v76
    %v79 = vmul.f32 %v77, 1.442695
    %v80 = vpow.pop %v79
    %v81 = vmul.f32 %v78, 1.442695
    %v82 = vpow.pop %v81
    %83 = vst [vmem:[#allocation7] sm:$0xff] %v80
    %84 = vst [vmem:[#allocation7 + $0x8] sm:$0xff] %v82
    // Predicated region
    $region18: #{tpu_custom_call.1} parent=1 // pred_check
      _
    $region19: #{tpu_custom_call.1} parent=1 // pred_check_branch
      %86 = sbr.rel (0) target = $region21
    $region20: #{tpu_custom_call.1} parent=1 // pred_region
      %s88 = ssub.s32 256, 256
      %89 = vsyncadd [#allocation4], %s88
      %s91 = sshll.u32 [#allocation7], 4
      %s92 = int_to_ptr.vmem [resolvable:$true] %s91
      %94 = dma.vmem_to_hbm [thread:$0]  %s92, 256, %s2, [#allocation4]
    $region21: #{tpu_custom_call.1} parent=1 // pred_fallthru
      _
    // Predicated region
    $region22: #{tpu_custom_call.1} parent=1 // pred_check
      _
    $region23: #{tpu_custom_call.1} parent=1 // pred_check_branch
      %96 = sbr.rel (0) target = $region25
    $region24: #{tpu_custom_call.1} parent=1 // pred_region
      %97 = dma.done [#allocation4], 256
    $region25: #{tpu_custom_call.1} parent=1 // pred_fallthru
      _
    %98 = vsyncpa [#allocation3], 1
    %99 = vsyncpa [#allocation4], 1
    %100 = vsyncpa [#allocation5], 1

</llo_original>
